<compile_context>
chip_gen: v7x
topology: tpu7x:2x2x1
jax: 0.10.0
libtpu: 0.0.40
codegen_flags: <defaults>
</compile_context>

<pallas_src>
import jax
import jax.numpy as jnp
import numpy as np
from jax import lax
from jax.experimental import pallas as pl
from jax.experimental.pallas import tpu as pltpu


def _corr_kernel(a_ref, b_ref, o_ref):
    # a_ref: (c, HW_A)   feature_A flattened (k = wA*h + hA), one batch element
    # b_ref: (c, TJ)     tile of feature_B flattened (j = hB*w + wB)
    # o_ref: (HW_A, TJ)  normalized correlation block, (k, j) layout
    a = a_ref[...]
    bt = b_ref[...]
    # corr[k, j] = sum_c a[c, k] * bt[c, j]: contract the channel axis of both
    # operands on the MXU, accumulate in f32 (operands may be bf16 for large c).
    corr = lax.dot_general(
        a, bt,
        dimension_numbers=(((0,), (0,)), ((), ())),
        preferred_element_type=jnp.float32,
    )
    corr = jnp.maximum(corr, 0.0)  # ReLU (before featureL2Norm)
    # featureL2Norm over the k axis (axis 0): rsqrt (EUP slot) + one VPU mul.
    inv = lax.rsqrt(jnp.sum(corr * corr, axis=0, keepdims=True) + 1e-6)
    o_ref[...] = (corr * inv).astype(o_ref.dtype)


def _vmem_capacity_bytes():
    try:
        return int(pltpu.get_tpu_info().vmem_capacity_bytes)
    except Exception:
        return 64 << 20  # conservative default (v7x per-core VMEM)


def feature_correlation(feature_A, feature_B):
    """FeatureCorrelation forward (3D, normalization=True, 'correlation').

    feature_A, feature_B: (b, c, h, w) float32 (NCHW, as in PyTorch)
    returns: (b, h*w, h, w), identical semantics to the torch module.
    """
    b, c, h, w = feature_A.shape
    hw = h * w
    out_dtype = feature_A.dtype

    # A: transpose(2,3).view(b, c, h*w) -> k = wA*h + hA.  Input-sized & cheap;
    # doing the swizzle in-kernel (einshape + reshape) risks a VMEM relayout and
    # the big output path dominates traffic anyway, so keep it in the wrapper.
    a_mat = jnp.transpose(feature_A, (0, 1, 3, 2)).reshape(b, c, hw)
    # B: view(b, c, h*w) -> j = hB*w + wB (no wrapper transpose of B).
    b_mat = feature_B.reshape(b, c, hw)

    # bf16 MXU operands when c is large enough for the matmul to matter;
    # accumulation stays f32 in-kernel and halves A/B HBM + VMEM traffic.
    if c >= 128 and a_mat.dtype == jnp.float32:
        a_mat = a_mat.astype(jnp.bfloat16)
        b_mat = b_mat.astype(jnp.bfloat16)
    in_bytes = jnp.dtype(a_mat.dtype).itemsize

    # ---- generation-aware tile / VMEM sizing --------------------------------
    vmem_cap = _vmem_capacity_bytes()
    headroom = 8 << 20                                   # Mosaic internal scratch
    budget = min(vmem_cap - headroom, 100 << 20)         # ~56 MiB v7x, ~100 MiB v5e/v6e

    def working_set(tj, a_bufs):
        return (a_bufs * c * hw * in_bytes               # A block(s), j-resident
                + 2 * c * tj * in_bytes                  # B tiles (double-buffered)
                + 2 * hw * tj * 4                        # out tiles (double-buffered)
                + hw * tj * 4)                           # f32 corr epilogue intermediate

    # Lane-dense j-tile candidates: multiples of 128 (or full hw when tiny),
    # largest first -> fewer grid-step overheads, unmasked wide stores.
    if hw <= 128:
        candidates = [hw]
    else:
        top = ((hw + 127) // 128) * 128
        candidates = list(range(top, 0, -128))
    # v7x has 2 TensorCores: guarantee >= 2 parallel grid steps when b == 1.
    need_split = (b == 1 and hw > 128)

    def pick(a_bufs):
        for tj in candidates:
            if need_split and pl.cdiv(hw, tj) < 2:
                continue
            if working_set(tj, a_bufs) <= budget:
                return tj
        return None

    a_bufs = 2
    tj = pick(a_bufs)
    if tj is None:
        # Double-buffered A does not fit: keep a single resident A buffer.
        a_bufs = 1
        tj = pick(a_bufs)
    if tj is None:
        tj = candidates[-1]
        # TODO(synk): very large h*w needs a two-pass / online k-normalization
        # to tile the k axis; not implemented (may spill on 64 MiB VMEM parts).

    n_j = pl.cdiv(hw, tj)
    hw_pad = n_j * tj
    if hw_pad != hw:
        # Pad only B (input-sized, cheap).  The output stays unpadded: the last
        # j tile is a partial block whose store Pallas masks, so there is NO
        # post-kernel slice/copy of the big (b, hw, hw) tensor.
        b_mat = jnp.pad(b_mat, ((0, 0), (0, 0), (0, hw_pad - hw)))

    vmem_limit = int(min(max(working_set(tj, a_bufs) + headroom, 32 << 20),
                         vmem_cap - (4 << 20)))

    a_spec_kwargs = {}
    if a_bufs == 1:
        # A only changes block index once per batch element; one exposed DMA
        # per b is negligible and this frees c*hw*in_bytes of VMEM for tj.
        a_spec_kwargs = dict(pipeline_mode=pl.Buffered(1))

    out = pl.pallas_call(
        _corr_kernel,
        out_shape=jax.ShapeDtypeStruct((b, hw, hw), out_dtype),
        grid_spec=pltpu.PrefetchScalarGridSpec(
            num_scalar_prefetch=0,
            grid=(b, n_j),
            in_specs=[
                # A block (c, hw) stays resident across the j grid axis.
                pl.BlockSpec((None, c, hw), lambda i, j: (i, 0, 0),
                             **a_spec_kwargs),
                # B tile (c, tj) advances along j.
                pl.BlockSpec((None, c, tj), lambda i, j: (i, 0, j)),
            ],
            out_specs=pl.BlockSpec((None, hw, tj), lambda i, j: (i, 0, j)),
        ),
        compiler_params=pltpu.CompilerParams(
            dimension_semantics=("parallel", "parallel"),
            vmem_limit_bytes=vmem_limit,
        ),
    )(a_mat, b_mat)

    # out[b, k, j] with j = hB*w + wB -> (b, h*w, h, w): exactly the PyTorch
    # output layout, no transpose of the (b, hw, hw) tensor needed.
    return out.reshape(b, hw, h, w)


def _reference(feature_A, feature_B):
    """Pure-JAX reference replicating the PyTorch forward exactly."""
    b, c, h, w = feature_A.shape
    hw = h * w
    fa = jnp.transpose(feature_A, (0, 1, 3, 2)).reshape(b, c, hw)
    fb = jnp.transpose(feature_B.reshape(b, c, hw), (0, 2, 1))
    mul = jnp.einsum("bjc,bck->bjk", fb, fa)
    corr = jnp.transpose(mul.reshape(b, h, w, hw), (0, 3, 1, 2))
    corr = jnp.maximum(corr, 0.0)
    norm = jnp.sqrt(jnp.sum(corr * corr, axis=1, keepdims=True) + 1e-6)
    return corr / norm


if __name__ == "__main__":
    key = jax.random.PRNGKey(0)
    kA, kB = jax.random.split(key)
    b, c, h, w = 2, 4, 16, 16
    feature_A = jax.random.normal(kA, (b, c, h, w), dtype=jnp.float32)
    feature_B = jax.random.normal(kB, (b, c, h, w), dtype=jnp.float32)

    out = jax.block_until_ready(feature_correlation(feature_A, feature_B))
    ref = jax.block_until_ready(_reference(feature_A, feature_B))

    assert out.shape == (b, h * w, h, w), out.shape
    np.testing.assert_allclose(np.asarray(out), np.asarray(ref), rtol=1e-4, atol=1e-5)

    print("KERNEL_OK")
</pallas_src>

<mosaic_0001>
module attributes {stable_mosaic.version = 11 : i64} {
  func.func @_corr_kernel(%arg0: i32, %arg1: i32, %arg2: memref<1x4x256xf32, #tpu.memory_space<vmem>>, %arg3: memref<1x4x256xf32, #tpu.memory_space<vmem>>, %arg4: memref<1x256x256xf32, #tpu.memory_space<vmem>>) attributes {dimension_semantics = [#tpu.dimension_semantics<parallel>, #tpu.dimension_semantics<parallel>], iteration_bounds = array<i64: 2, 1>, scalar_prefetch = 0 : i64, scratch_operands = 0 : i64, tpu.core_type = #tpu.core_type<tc>, window_params = [{transform_indices = @transform_0, window_bounds = array<i64: 1, 4, 256>}, {transform_indices = @transform_1, window_bounds = array<i64: 1, 4, 256>}, {transform_indices = @transform_2, window_bounds = array<i64: 1, 256, 256>}]} {
    %c0 = arith.constant 0 : index
    %c0_0 = arith.constant 0 : index
    %c0_1 = arith.constant 0 : index
    %0 = vector.load %arg2[%c0, %c0_0, %c0_1] : memref<1x4x256xf32, #tpu.memory_space<vmem>>, vector<1x4x256xf32>
    %1 = vector.shape_cast %0 : vector<1x4x256xf32> to vector<4x256xf32>
    %c0_2 = arith.constant 0 : index
    %c0_3 = arith.constant 0 : index
    %c0_4 = arith.constant 0 : index
    %2 = vector.load %arg3[%c0_2, %c0_3, %c0_4] : memref<1x4x256xf32, #tpu.memory_space<vmem>>, vector<1x4x256xf32>
    %3 = vector.shape_cast %2 : vector<1x4x256xf32> to vector<4x256xf32>
    %cst = arith.constant dense<0.000000e+00> : vector<256x256xf32>
    %4 = tpu.matmul %1, %3, %cst {dimension_numbers = #tpu.dot_dimension_numbers<[0], [0], [1], [1], [0, 1, 1, 1], [], []>} : vector<4x256xf32>, vector<4x256xf32>, vector<256x256xf32> -> vector<256x256xf32>
    %cst_5 = arith.constant 0.000000e+00 : f32
    %5 = vector.broadcast %cst_5 : f32 to vector<256x256xf32>
    %6 = arith.maximumf %4, %5 : vector<256x256xf32>
    %7 = arith.mulf %6, %6 : vector<256x256xf32>
    %cst_6 = arith.constant dense<0.000000e+00> : vector<256xf32>
    %8 = vector.multi_reduction <add>, %7, %cst_6 [0] : vector<256x256xf32> to vector<256xf32>
    %9 = vector.shape_cast %8 : vector<256xf32> to vector<1x256xf32>
    %cst_7 = arith.constant 9.99999997E-7 : f32
    %10 = vector.broadcast %cst_7 : f32 to vector<1x256xf32>
    %11 = arith.addf %9, %10 : vector<1x256xf32>
    %12 = math.rsqrt %11 : vector<1x256xf32>
    %13 = vector.broadcast %12 : vector<1x256xf32> to vector<256x256xf32>
    %14 = arith.mulf %6, %13 : vector<256x256xf32>
    %c0_8 = arith.constant 0 : index
    %c0_9 = arith.constant 0 : index
    %c0_10 = arith.constant 0 : index
    %15 = vector.load %arg4[%c0_8, %c0_9, %c0_10] : memref<1x256x256xf32, #tpu.memory_space<vmem>>, vector<1x256x256xf32>
    %16 = vector.shape_cast %15 : vector<1x256x256xf32> to vector<256x256xf32>
    %17 = vector.shape_cast %14 : vector<256x256xf32> to vector<1x256x256xf32>
    tpu.vector_store %arg4[%c0_8, %c0_9, %c0_10], %17 {strides = array<i32>} : memref<1x256x256xf32, #tpu.memory_space<vmem>>, vector<1x256x256xf32>,
    return
  }
  func.func @transform_0(%arg0: i32, %arg1: i32) -> (i32, i32, i32) {
    %c0_i32 = arith.constant 0 : i32
    %c0_i32_0 = arith.constant 0 : i32
    %c0_i32_1 = arith.constant 0 : i32
    return %arg0, %c0_i32, %c0_i32_0 : i32, i32, i32
  }
  func.func @transform_1(%arg0: i32, %arg1: i32) -> (i32, i32, i32) {
    %c0_i32 = arith.constant 0 : i32
    %c0_i32_0 = arith.constant 0 : i32
    return %arg0, %c0_i32, %arg1 : i32, i32, i32
  }
  func.func @transform_2(%arg0: i32, %arg1: i32) -> (i32, i32, i32) {
    %c0_i32 = arith.constant 0 : i32
    %c0_i32_0 = arith.constant 0 : i32
    return %arg0, %c0_i32, %arg1 : i32, i32, i32
  }
}

</mosaic_0001>

<llo_original>
// kernel: tpu_custom_call.1
$region0: #{tpu_custom_call.1}
  #allocation0 [shape = 'u32[]', space=smem, size = 0x4, offset = 0x4, fixed_abs, tag = 'smem constant byte address 0x4 - core index']
  #allocation1 [shape = 'u32[144,128]{1,0:T(1,128)}', space=vmem, size = 0x12000, scoped, tag = 'internal scratch']
  %s0 = inlined_call_operand.hbm [shape: f32[2,4,256], index: 0, kind: input, shape index: {}]
  %s1 = inlined_call_operand.hbm [shape: f32[2,4,256], index: 1, kind: input, shape index: {}]
  %s2 = inlined_call_operand.hbm [shape: f32[2,256,256], index: 2, kind: output, shape index: {}]
  %s3 = sld [smem:[#allocation0]]
  $region49: #{tpu_custom_call.1} parent=0
    _
  %s5 = ssub.s32 1, %s3
  %s6 = scalar_select 0, %s5, %s3
  $region1: #{tpu_custom_call.1} parent=0
    #allocation2 [shape = 'u8[8192]{0}', space=vmem, size = 0x2000, scoped, tag = 'input window, operand 0']
    #allocation3 [shape = 's32[2]{0}', space=sflag, size = 0x8, scoped, tag = 'scoped memory for tpu_custom_call.1']
    #allocation4 [shape = 's32[2]{0}', space=sflag, size = 0x8, scoped, tag = 'scoped memory for tpu_custom_call.1']
    #allocation5 [shape = 'u8[8192]{0}', space=vmem, size = 0x2000, scoped, tag = 'input window, operand 1']
    #allocation6 [shape = 's32[2]{0}', space=sflag, size = 0x8, scoped, tag = 'scoped memory for tpu_custom_call.1']
    #allocation7 [shape = 'u8[524288]{0}', space=vmem, size = 0x80000, scoped, tag = 'output window, operand 0']
    %7 = vsyncpa [#allocation3], 0
    %s8 = scalar_lea.sflag [#allocation3], 1
    %9 = vsyncpa %s8, 0
    %10 = vsyncpa [#allocation6], 0
    %s11 = scalar_lea.sflag [#allocation6], 1
    %12 = vsyncpa %s11, 0
    %13 = vsyncpa [#allocation4], 0
    %s14 = scalar_lea.sflag [#allocation4], 1
    %15 = vsyncpa %s14, 0
    loop: start=0, step=1, limit=4
    $region2: #{tpu_custom_call.1} parent=1 // loop_pre_header
      _
    $region3: #{tpu_custom_call.1} parent=1 // loop_header
      %s17 = sphi 0, %s21
      %p18 = scmp.ge.s32.totalorder %s17, 4
      %s24 = sphi 0, %s36
      %s25 = sphi 0, %s32
      %s26 = sphi 0, %s24
      %s27 = sphi 0, %s25
      %s28 = sphi 0, %s26
      %s29 = sphi 0, %s27
      %s39 = sphi 0, %s41
      %s42 = sphi 0, %s39
      %s43 = sphi 0, %s42
      %s59 = sphi 0, %s43
      %s67 = sphi 0, %s69
      %s70 = sphi 0, %s67
      %s71 = sphi 0, %s70
      %s87 = sphi 0, %s71
      %s95 = sphi 0, %s97
      %s98 = sphi 0, %s95
      %s99 = sphi 0, %s98
      %s115 = sphi 0, %s99
    $region4: #{tpu_custom_call.1} parent=1 // loop_header_branch
      %20 = sbr.rel (%p18) target = $region8
    $region5: #{tpu_custom_call.1} parent=1 // loop_body
      %s22 = ssub.s32 %s17, 1
      %s23 = ssub.s32 %s17, 2
      %s30 = sadd.s32 1, %s25
      %p31 = scmp.ge.s32.totalorder %s30, 1
      %s32 = scalar_select %p31, 0, %s30
      %s33 = sadd.s32 1, %s24
      %s34 = scalar_select %p31, %s33, %s24
      %p35 = scmp.ge.s32.totalorder %s34, 2
      %s36 = scalar_select %p35, 0, %s34
      %s37 = ssub.s32 %s24, %s36
      %p38 = scmp.eq.s32.totalorder %s37, 0
      %s40 = sadd.s32 %s39, 1
      %s41 = scalar_select %p38, %s39, %s40
      %p44 = pneg %p38
      %p45 = scmp.eq.s32.totalorder %s17, 1
      %p46 = por %p44, %p45
      %p47 = scmp.ne.s32.totalorder %s39, %s42
      %p48 = scmp.eq.s32.totalorder %s17, 0
      %p49 = por %p47, %p48
      %p50 = scmp.ne.s32.totalorder %s39, %s42
      %p51 = scmp.eq.s32.totalorder %s22, 1
      %p52 = por %p50, %p51
      %p53 = scmp.ne.s32.totalorder %s42, %s43
      %p54 = scmp.eq.s32.totalorder %s22, 0
      %p55 = por %p53, %p54
      %p56 = scmp.ne.s32.totalorder %s42, %s43
      %p57 = scmp.eq.s32.totalorder %s23, 1
      %p58 = por %p56, %p57
      %p60 = scmp.ne.s32.totalorder %s43, %s59
      %p61 = scmp.eq.s32.totalorder %s23, 0
      %p62 = por %p60, %p61
      %s63 = ssub.s32 %s24, %s36
      %s64 = ssub.s32 %s25, %s32
      %s65 = sor.u32 %s63, %s64
      %p66 = scmp.eq.s32.totalorder %s65, 0
      %s68 = sadd.s32 %s67, 1
      %s69 = scalar_select %p66, %s67, %s68
      %p72 = pneg %p66
      %p73 = scmp.eq.s32.totalorder %s17, 1
      %p74 = por %p72, %p73
      %p75 = scmp.ne.s32.totalorder %s67, %s70
      %p76 = scmp.eq.s32.totalorder %s17, 0
      %p77 = por %p75, %p76
      %p78 = scmp.ne.s32.totalorder %s67, %s70
      %p79 = scmp.eq.s32.totalorder %s22, 1
      %p80 = por %p78, %p79
      %p81 = scmp.ne.s32.totalorder %s70, %s71
      %p82 = scmp.eq.s32.totalorder %s22, 0
      %p83 = por %p81, %p82
      %p84 = scmp.ne.s32.totalorder %s70, %s71
      %p85 = scmp.eq.s32.totalorder %s23, 1
      %p86 = por %p84, %p85
      %p88 = scmp.ne.s32.totalorder %s71, %s87
      %p89 = scmp.eq.s32.totalorder %s23, 0
      %p90 = por %p88, %p89
      %s91 = ssub.s32 %s24, %s36
      %s92 = ssub.s32 %s25, %s32
      %s93 = sor.u32 %s91, %s92
      %p94 = scmp.eq.s32.totalorder %s93, 0
      %s96 = sadd.s32 %s95, 1
      %s97 = scalar_select %p94, %s95, %s96
      %p100 = pneg %p94
      %p101 = scmp.eq.s32.totalorder %s17, 1
      %p102 = por %p100, %p101
      %p103 = scmp.ne.s32.totalorder %s95, %s98
      %p104 = scmp.eq.s32.totalorder %s17, 0
      %p105 = por %p103, %p104
      %p106 = scmp.ne.s32.totalorder %s95, %s98
      %p107 = scmp.eq.s32.totalorder %s22, 1
      %p108 = por %p106, %p107
      %p109 = scmp.ne.s32.totalorder %s98, %s99
      %p110 = scmp.eq.s32.totalorder %s22, 0
      %p111 = por %p109, %p110
      %p112 = scmp.ne.s32.totalorder %s98, %s99
      %p113 = scmp.eq.s32.totalorder %s23, 1
      %p114 = por %p112, %p113
      %p116 = scmp.ne.s32.totalorder %s99, %s115
      %p117 = scmp.eq.s32.totalorder %s23, 0
      %p118 = por %p116, %p117
      %p119 = scmp.le.s32.totalorder 1, %s17
      %p120 = scmp.lt.s32.totalorder %s17, 3
      %p121 = pnand %p119, %p120
      %p122 = pneg %p121
      // Predicated region
      $region9: #{tpu_custom_call.1} parent=5 // pred_check
        _
      $region10: #{tpu_custom_call.1} parent=5 // pred_check_branch
        %124 = sbr.rel (%p121) target = $region12
      $region11: #{tpu_custom_call.1} parent=5 // pred_region
        %s125 = ssub.s32 %s17, 1
      $region12: #{tpu_custom_call.1} parent=5 // pred_fallthru
        _
      %p126 = scmp.lt.s32.totalorder %s17, 2
      // Predicated region
      $region13: #{tpu_custom_call.1} parent=5 // pred_check
        %p127 = pneg %p126
      $region14: #{tpu_custom_call.1} parent=5 // pred_check_branch
        %129 = sbr.rel (%p127) target = $region16
      $region15: #{tpu_custom_call.1} parent=5 // pred_region
        // Predicated region
        $region17: #{tpu_custom_call.1} parent=15 // pred_check
          %p130 = pneg %p49
        $region18: #{tpu_custom_call.1} parent=15 // pred_check_branch
          %132 = sbr.rel (%p130) target = $region20
        $region19: #{tpu_custom_call.1} parent=15 // pred_region
          %s133 = sand.u32 %s39, 1
          %s134 = scalar_lea.sflag [#allocation3], %s133
          %s135 = sand.u32 %s39, 1
          %s136 = smul.addr %s135, 8
          %s137 = scalar_lea.vmem [#allocation2], %s136
          %s139 = ssub.s32 128, 128
          %140 = vsyncadd %s134, %s139
          %s141 = smul.addr %s24, 2
          %s142 = smul.addr %s141, 64
          %s143 = scalar_lea.hbm %s0, %s142
          %s145 = sshll.u32 %s137, 4
          %s146 = int_to_ptr.vmem [resolvable:$true] %s145
          %148 = dma.hbm_to_vmem [thread:$0]  %s143, 128, %s146, %s134
        $region20: #{tpu_custom_call.1} parent=15 // pred_fallthru
          _
        // Predicated region
        $region21: #{tpu_custom_call.1} parent=15 // pred_check
          %p149 = pneg %p77
        $region22: #{tpu_custom_call.1} parent=15 // pred_check_branch
          %151 = sbr.rel (%p149) target = $region24
        $region23: #{tpu_custom_call.1} parent=15 // pred_region
          %s152 = sand.u32 %s67, 1
          %s153 = scalar_lea.sflag [#allocation6], %s152
          %s154 = sand.u32 %s67, 1
          %s155 = smul.addr %s154, 8
          %s156 = scalar_lea.vmem [#allocation5], %s155
          %s157 = smul.u32 2, %s25
          %s159 = ssub.s32 128, 128
          %160 = vsyncadd %s153, %s159
          %s161 = smul.addr %s24, 2
          %s162 = sadd.s32 %s157, %s161
          %s163 = smul.addr %s162, 64
          %s164 = scalar_lea.hbm %s1, %s163
          %s166 = sshll.u32 %s156, 4
          %s167 = int_to_ptr.vmem [resolvable:$true] %s166
          %169 = dma.hbm_to_vmem [thread:$0]  %s164, 128, %s167, %s153
        $region24: #{tpu_custom_call.1} parent=15 // pred_fallthru
          _
      $region16: #{tpu_custom_call.1} parent=5 // pred_fallthru
        _
      %p170 = scmp.le.s32.totalorder 1, %s17
      %p171 = scmp.lt.s32.totalorder %s17, 3
      %p172 = pnand %p170, %p171
      %p173 = pneg %p172
      // Predicated region
      $region25: #{tpu_custom_call.1} parent=5 // pred_check
        _
      $region26: #{tpu_custom_call.1} parent=5 // pred_check_branch
        %175 = sbr.rel (%p172) target = $region28
      $region27: #{tpu_custom_call.1} parent=5 // pred_region
        %s176 = ssub.s32 %s17, 1
        %s177 = sand.u32 %s42, 1
        %s178 = scalar_lea.sflag [#allocation3], %s177
        %s179 = sand.u32 %s42, 1
        %s180 = smul.addr %s179, 8
        %s181 = scalar_lea.vmem [#allocation2], %s180
        // Predicated region
        $region29: #{tpu_custom_call.1} parent=27 // pred_check
          %p182 = pneg %p55
        $region30: #{tpu_custom_call.1} parent=27 // pred_check_branch
          %184 = sbr.rel (%p182) target = $region32
        $region31: #{tpu_custom_call.1} parent=27 // pred_region
          %185 = dma.done %s178, 128
        $region32: #{tpu_custom_call.1} parent=27 // pred_fallthru
          _
        %s186 = sand.u32 %s70, 1
        %s187 = scalar_lea.sflag [#allocation6], %s186
        %s188 = sand.u32 %s70, 1
        %s189 = smul.addr %s188, 8
        %s190 = scalar_lea.vmem [#allocation5], %s189
        // Predicated region
        $region33: #{tpu_custom_call.1} parent=27 // pred_check
          %p191 = pneg %p83
        $region34: #{tpu_custom_call.1} parent=27 // pred_check_branch
          %193 = sbr.rel (%p191) target = $region36
        $region35: #{tpu_custom_call.1} parent=27 // pred_region
          %194 = dma.done %s187, 128
        $region36: #{tpu_custom_call.1} parent=27 // pred_fallthru
          _
        %s195 = sand.u32 %s42, 1
        %s196 = scalar_lea.sflag [#allocation3], %s195
        %s197 = sand.u32 %s42, 1
        %s198 = smul.addr %s197, 8
        %s199 = scalar_lea.vmem [#allocation2], %s198
        %p200 = pneg %p55
        %p201 = pneg %p52
        %s202 = sand.u32 %s70, 1
        %s203 = scalar_lea.sflag [#allocation6], %s202
        %s204 = sand.u32 %s70, 1
        %s205 = smul.addr %s204, 8
        %s206 = scalar_lea.vmem [#allocation5], %s205
        %p207 = pneg %p83
        %p208 = pneg %p80
        %p209 = pneg %p111
        %p210 = pneg %p108
        %s211 = sand.u32 %s98, 1
        %s212 = scalar_lea.sflag [#allocation4], %s211
        %s213 = sand.u32 %s98, 1
        %s214 = smul.addr %s213, 512
        %s215 = scalar_lea.vmem [#allocation7], %s214
        %s216 = smul.u32 2, %s27
        %s217 = smul.u32 2, %s27
        %v218 = vld [vmem:[%s181] sm:$0xff]
        %v219 = vld [vmem:[%s190] sm:$0xff]
        %v221 = vcombine.high %v218, %v218
        %223 = vxpose.xlu0.b32.start [1/16] %v218, 128
        %224 = vxpose.xlu0.b32.cont [2/16] 0.0, 128
        %225 = vxpose.xlu0.b32.cont [3/16] 0.0, 128
        %226 = vxpose.xlu0.b32.cont [4/16] 0.0, 128
        %227 = vxpose.xlu0.b32.cont [5/16] 0.0, 128
        %228 = vxpose.xlu0.b32.cont [6/16] 0.0, 128
        %229 = vxpose.xlu0.b32.cont [7/16] 0.0, 128
        %230 = vxpose.xlu0.b32.cont [8/16] 0.0, 128
        %231 = vxpose.xlu0.b32.cont [9/16] 0.0, 128
        %232 = vxpose.xlu0.b32.cont [10/16] 0.0, 128
        %233 = vxpose.xlu0.b32.cont [11/16] 0.0, 128
        %234 = vxpose.xlu0.b32.cont [12/16] 0.0, 128
        %235 = vxpose.xlu0.b32.cont [13/16] 0.0, 128
        %236 = vxpose.xlu0.b32.cont [14/16] 0.0, 128
        %237 = vxpose.xlu0.b32.cont [15/16] 0.0, 128
        %238 = vxpose.xlu0.b32.end [16/16] 0.0, 128
        %v239 = vpop.trf.xlu0
        %v240 = vpop.trf.xlu0
        %v241 = vpop.trf.xlu0
        %v242 = vpop.trf.xlu0
        %v243 = vpop.trf.xlu0
        %v244 = vpop.trf.xlu0
        %v245 = vpop.trf.xlu0
        %v246 = vpop.trf.xlu0
        %v247 = vpop.trf.xlu0
        %v248 = vpop.trf.xlu0
        %v249 = vpop.trf.xlu0
        %v250 = vpop.trf.xlu0
        %v251 = vpop.trf.xlu0
        %v252 = vpop.trf.xlu0
        %v253 = vpop.trf.xlu0
        %v254 = vpop.trf.xlu0
        %255 = vxpose.xlu0.b32.start [1/16] %v221, 128
        %256 = vxpose.xlu0.b32.cont [2/16] 0.0, 128
        %257 = vxpose.xlu0.b32.cont [3/16] 0.0, 128
        %258 = vxpose.xlu0.b32.cont [4/16] 0.0, 128
        %259 = vxpose.xlu0.b32.cont [5/16] 0.0, 128
        %260 = vxpose.xlu0.b32.cont [6/16] 0.0, 128
        %261 = vxpose.xlu0.b32.cont [7/16] 0.0, 128
        %262 = vxpose.xlu0.b32.cont [8/16] 0.0, 128
        %263 = vxpose.xlu0.b32.cont [9/16] 0.0, 128
        %264 = vxpose.xlu0.b32.cont [10/16] 0.0, 128
        %265 = vxpose.xlu0.b32.cont [11/16] 0.0, 128
        %266 = vxpose.xlu0.b32.cont [12/16] 0.0, 128
        %267 = vxpose.xlu0.b32.cont [13/16] 0.0, 128
        %268 = vxpose.xlu0.b32.cont [14/16] 0.0, 128
        %269 = vxpose.xlu0.b32.cont [15/16] 0.0, 128
        %270 = vxpose.xlu0.b32.end [16/16] 0.0, 128
        %v271 = vpop.trf.xlu0
        %v272 = vpop.trf.xlu0
        %v273 = vpop.trf.xlu0
        %v274 = vpop.trf.xlu0
        %v275 = vpop.trf.xlu0
        %v276 = vpop.trf.xlu0
        %v277 = vpop.trf.xlu0
        %v278 = vpop.trf.xlu0
        %v279 = vpop.trf.xlu0
        %v280 = vpop.trf.xlu0
        %v281 = vpop.trf.xlu0
        %v282 = vpop.trf.xlu0
        %v283 = vpop.trf.xlu0
        %v284 = vpop.trf.xlu0
        %v285 = vpop.trf.xlu0
        %v286 = vpop.trf.xlu0
        %v288 = vcombine.high %v219, %v219
        %vm289 = vcmask 31744
        %v291 = vsel %vm289, %v239, 0
        %v294 = vsel %vm289, %v240, 0
        %v297 = vsel %vm289, %v241, 0
        %v300 = vsel %vm289, %v242, 0
        %v303 = vsel %vm289, %v243, 0
        %v306 = vsel %vm289, %v244, 0
        %v309 = vsel %vm289, %v245, 0
        %v312 = vsel %vm289, %v246, 0
        %v315 = vsel %vm289, %v247, 0
        %v318 = vsel %vm289, %v248, 0
        %v321 = vsel %vm289, %v249, 0
        %v324 = vsel %vm289, %v250, 0
        %v327 = vsel %vm289, %v251, 0
        %v330 = vsel %vm289, %v252, 0
        %v333 = vsel %vm289, %v253, 0
        %v336 = vsel %vm289, %v254, 0
        %v339 = vsel %vm289, %v271, 0
        %v342 = vsel %vm289, %v272, 0
        %v345 = vsel %vm289, %v273, 0
        %v348 = vsel %vm289, %v274, 0
        %v351 = vsel %vm289, %v275, 0
        %v354 = vsel %vm289, %v276, 0
        %v357 = vsel %vm289, %v277, 0
        %v360 = vsel %vm289, %v278, 0
        %v363 = vsel %vm289, %v279, 0
        %v366 = vsel %vm289, %v280, 0
        %v369 = vsel %vm289, %v281, 0
        %v372 = vsel %vm289, %v282, 0
        %v375 = vsel %vm289, %v283, 0
        %v378 = vsel %vm289, %v284, 0
        %v381 = vsel %vm289, %v285, 0
        %v384 = vsel %vm289, %v286, 0
        %vm386 = vcmask 1043456
        %v387 = vsel %vm386, %v219, 0
        %v389 = vsel %vm386, %v288, 0
        %391 = vmatprep.subr.mxu0 %v389
        %392 = vmatpush1.msra.mxu0 %v387
        %393 = vmatprep.subr.mxu0 0.0
        %394 = vmatpush1.msra.mxu0 0.0
        %395 = vmatprep.subr.mxu0 0.0
        %396 = vmatpush1.msra.mxu0 0.0
        %397 = vmatprep.subr.mxu0 0.0
        %398 = vmatpush1.msra.mxu0 0.0
        %399 = vmatprep.subr.mxu0 0.0
        %400 = vmatpush1.msra.mxu0 0.0
        %401 = vmatprep.subr.mxu0 0.0
        %402 = vmatpush1.msra.mxu0 0.0
        %403 = vmatprep.subr.mxu0 0.0
        %404 = vmatpush1.msra.mxu0 0.0
        %405 = vmatprep.subr.mxu0 0.0
        %406 = vmatpush1.msra.mxu0 0.0
        %407 = vmatprep.subr.mxu0 0.0
        %408 = vmatpush1.msra.mxu0 0.0
        %409 = vmatprep.subr.mxu0 0.0
        %410 = vmatpush1.msra.mxu0 0.0
        %411 = vmatprep.subr.mxu0 0.0
        %412 = vmatpush1.msra.mxu0 0.0
        %413 = vmatprep.subr.mxu0 0.0
        %414 = vmatpush1.msra.mxu0 0.0
        %415 = vmatprep.subr.mxu0 0.0
        %416 = vmatpush1.msra.mxu0 0.0
        %417 = vmatprep.subr.mxu0 0.0
        %418 = vmatpush1.msra.mxu0 0.0
        %419 = vmatprep.subr.mxu0 0.0
        %420 = vmatpush1.msra.mxu0 0.0
        %421 = vmatprep.subr.mxu0 0.0
        %422 = vmatpush1.msra.mxu0 0.0
        %423 = vmatprep.subr.mxu0 0.0
        %424 = vmatpush1.msra.mxu0 0.0
        %425 = vmatprep.subr.mxu0 0.0
        %426 = vmatpush1.msra.mxu0 0.0
        %427 = vmatprep.subr.mxu0 0.0
        %428 = vmatpush1.msra.mxu0 0.0
        %429 = vmatprep.subr.mxu0 0.0
        %430 = vmatpush1.msra.mxu0 0.0
        %431 = vmatprep.subr.mxu0 0.0
        %432 = vmatpush1.msra.mxu0 0.0
        %433 = vmatprep.subr.mxu0 0.0
        %434 = vmatpush1.msra.mxu0 0.0
        %435 = vmatprep.subr.mxu0 0.0
        %436 = vmatpush1.msra.mxu0 0.0
        %437 = vmatprep.subr.mxu0 0.0
        %438 = vmatpush1.msra.mxu0 0.0
        %439 = vmatprep.subr.mxu0 0.0
        %440 = vmatpush1.msra.mxu0 0.0
        %441 = vmatprep.subr.mxu0 0.0
        %442 = vmatpush1.msra.mxu0 0.0
        %443 = vmatprep.subr.mxu0 0.0
        %444 = vmatpush1.msra.mxu0 0.0
        %445 = vmatprep.subr.mxu0 0.0
        %446 = vmatpush1.msra.mxu0 0.0
        %447 = vmatprep.subr.mxu0 0.0
        %448 = vmatpush1.msra.mxu0 0.0
        %449 = vmatprep.subr.mxu0 0.0
        %450 = vmatpush1.msra.mxu0 0.0
        %451 = vmatprep.subr.mxu0 0.0
        %452 = vmatpush1.msra.mxu0 0.0
        %453 = vmatprep.subr.mxu0 0.0
        %454 = vmatpush1.msra.mxu0 0.0
        %455 = vmatprep.mubr.f32.mxu0 0.0
        %456 = vmatmul.mubr.f32.gmra.mrb[0].mxu0 %v291
        %v457 = vpop.f32.mrb[0].mxu0
        %v458 = vadd.f32 0.0, %v457
        %v459 = vpop.f32.mrb[0].mxu0
        %v460 = vadd.f32 0.0, %v459
        %461 = vmatprep.mubr.f32.mxu0 0.0
        %462 = vmatmul.mubr.f32.gmra.mrb[0].mxu0 %v294
        %v463 = vpop.f32.mrb[0].mxu0
        %v464 = vadd.f32 0.0, %v463
        %v465 = vpop.f32.mrb[0].mxu0
        %v466 = vadd.f32 0.0, %v465
        %467 = vmatprep.mubr.f32.mxu0 0.0
        %468 = vmatmul.mubr.f32.gmra.mrb[0].mxu0 %v297
        %v469 = vpop.f32.mrb[0].mxu0
        %v470 = vadd.f32 0.0, %v469
        %v471 = vpop.f32.mrb[0].mxu0
        %v472 = vadd.f32 0.0, %v471
        %473 = vmatprep.mubr.f32.mxu0 0.0
        %474 = vmatmul.mubr.f32.gmra.mrb[0].mxu0 %v300
        %v475 = vpop.f32.mrb[0].mxu0
        %v476 = vadd.f32 0.0, %v475
        %v477 = vpop.f32.mrb[0].mxu0
        %v478 = vadd.f32 0.0, %v477
        %479 = vmatprep.mubr.f32.mxu0 0.0
        %480 = vmatmul.mubr.f32.gmra.mrb[0].mxu0 %v303
        %v481 = vpop.f32.mrb[0].mxu0
        %v482 = vadd.f32 0.0, %v481
        %v483 = vpop.f32.mrb[0].mxu0
        %v484 = vadd.f32 0.0, %v483
        %485 = vmatprep.mubr.f32.mxu0 0.0
        %486 = vmatmul.mubr.f32.gmra.mrb[0].mxu0 %v306
        %v487 = vpop.f32.mrb[0].mxu0
        %v488 = vadd.f32 0.0, %v487
        %v489 = vpop.f32.mrb[0].mxu0
        %v490 = vadd.f32 0.0, %v489
        %491 = vmatprep.mubr.f32.mxu0 0.0
        %492 = vmatmul.mubr.f32.gmra.mrb[0].mxu0 %v309
        %v493 = vpop.f32.mrb[0].mxu0
        %v494 = vadd.f32 0.0, %v493
        %v495 = vpop.f32.mrb[0].mxu0
        %v496 = vadd.f32 0.0, %v495
        %497 = vmatprep.mubr.f32.mxu0 0.0
        %498 = vmatmul.mubr.f32.gmra.mrb[0].mxu0 %v312
        %v499 = vpop.f32.mrb[0].mxu0
        %v500 = vadd.f32 0.0, %v499
        %v501 = vpop.f32.mrb[0].mxu0
        %v502 = vadd.f32 0.0, %v501
        %503 = vmatprep.mubr.f32.mxu0 0.0
        %504 = vmatmul.mubr.f32.gmra.mrb[0].mxu0 %v315
        %v505 = vpop.f32.mrb[0].mxu0
        %v506 = vadd.f32 0.0, %v505
        %v507 = vpop.f32.mrb[0].mxu0
        %v508 = vadd.f32 0.0, %v507
        %509 = vmatprep.mubr.f32.mxu0 0.0
        %510 = vmatmul.mubr.f32.gmra.mrb[0].mxu0 %v318
        %v511 = vpop.f32.mrb[0].mxu0
        %v512 = vadd.f32 0.0, %v511
        %v513 = vpop.f32.mrb[0].mxu0
        %v514 = vadd.f32 0.0, %v513
        %515 = vmatprep.mubr.f32.mxu0 0.0
        %516 = vmatmul.mubr.f32.gmra.mrb[0].mxu0 %v321
        %v517 = vpop.f32.mrb[0].mxu0
        %v518 = vadd.f32 0.0, %v517
        %v519 = vpop.f32.mrb[0].mxu0
        %v520 = vadd.f32 0.0, %v519
        %521 = vmatprep.mubr.f32.mxu0 0.0
        %522 = vmatmul.mubr.f32.gmra.mrb[0].mxu0 %v324
        %v523 = vpop.f32.mrb[0].mxu0
        %v524 = vadd.f32 0.0, %v523
        %v525 = vpop.f32.mrb[0].mxu0
        %v526 = vadd.f32 0.0, %v525
        %527 = vmatprep.mubr.f32.mxu0 0.0
        %528 = vmatmul.mubr.f32.gmra.mrb[0].mxu0 %v327
        %v529 = vpop.f32.mrb[0].mxu0
        %v530 = vadd.f32 0.0, %v529
        %v531 = vpop.f32.mrb[0].mxu0
        %v532 = vadd.f32 0.0, %v531
        %533 = vmatprep.mubr.f32.mxu0 0.0
        %534 = vmatmul.mubr.f32.gmra.mrb[0].mxu0 %v330
        %v535 = vpop.f32.mrb[0].mxu0
        %v536 = vadd.f32 0.0, %v535
        %v537 = vpop.f32.mrb[0].mxu0
        %v538 = vadd.f32 0.0, %v537
        %539 = vmatprep.mubr.f32.mxu0 0.0
        %540 = vmatmul.mubr.f32.gmra.mrb[0].mxu0 %v333
        %v541 = vpop.f32.mrb[0].mxu0
        %v542 = vadd.f32 0.0, %v541
        %v543 = vpop.f32.mrb[0].mxu0
        %v544 = vadd.f32 0.0, %v543
        %545 = vmatprep.mubr.f32.mxu0 0.0
        %546 = vmatmul.mubr.f32.gmra.mrb[0].mxu0 %v336
        %v547 = vpop.f32.mrb[0].mxu0
        %v548 = vadd.f32 0.0, %v547
        %v549 = vpop.f32.mrb[0].mxu0
        %v550 = vadd.f32 0.0, %v549
        %551 = vmatprep.mubr.f32.mxu0 0.0
        %552 = vmatmul.mubr.f32.gmra.mrb[0].mxu0 %v339
        %v553 = vpop.f32.mrb[0].mxu0
        %v554 = vadd.f32 0.0, %v553
        %v555 = vpop.f32.mrb[0].mxu0
        %v556 = vadd.f32 0.0, %v555
        %557 = vmatprep.mubr.f32.mxu0 0.0
        %558 = vmatmul.mubr.f32.gmra.mrb[0].mxu0 %v342
        %v559 = vpop.f32.mrb[0].mxu0
        %v560 = vadd.f32 0.0, %v559
        %v561 = vpop.f32.mrb[0].mxu0
        %v562 = vadd.f32 0.0, %v561
        %563 = vmatprep.mubr.f32.mxu0 0.0
        %564 = vmatmul.mubr.f32.gmra.mrb[0].mxu0 %v345
        %v565 = vpop.f32.mrb[0].mxu0
        %v566 = vadd.f32 0.0, %v565
        %v567 = vpop.f32.mrb[0].mxu0
        %v568 = vadd.f32 0.0, %v567
        %569 = vmatprep.mubr.f32.mxu0 0.0
        %570 = vmatmul.mubr.f32.gmra.mrb[0].mxu0 %v348
        %v571 = vpop.f32.mrb[0].mxu0
        %v572 = vadd.f32 0.0, %v571
        %v573 = vpop.f32.mrb[0].mxu0
        %v574 = vadd.f32 0.0, %v573
        %575 = vmatprep.mubr.f32.mxu0 0.0
        %576 = vmatmul.mubr.f32.gmra.mrb[0].mxu0 %v351
        %v577 = vpop.f32.mrb[0].mxu0
        %v578 = vadd.f32 0.0, %v577
        %v579 = vpop.f32.mrb[0].mxu0
        %v580 = vadd.f32 0.0, %v579
        %581 = vmatprep.mubr.f32.mxu0 0.0
        %582 = vmatmul.mubr.f32.gmra.mrb[0].mxu0 %v354
        %v583 = vpop.f32.mrb[0].mxu0
        %v584 = vadd.f32 0.0, %v583
        %v585 = vpop.f32.mrb[0].mxu0
        %v586 = vadd.f32 0.0, %v585
        %587 = vmatprep.mubr.f32.mxu0 0.0
        %588 = vmatmul.mubr.f32.gmra.mrb[0].mxu0 %v357
        %v589 = vpop.f32.mrb[0].mxu0
        %v590 = vadd.f32 0.0, %v589
        %v591 = vpop.f32.mrb[0].mxu0
        %v592 = vadd.f32 0.0, %v591
        %593 = vmatprep.mubr.f32.mxu0 0.0
        %594 = vmatmul.mubr.f32.gmra.mrb[0].mxu0 %v360
        %v595 = vpop.f32.mrb[0].mxu0
        %v596 = vadd.f32 0.0, %v595
        %v597 = vpop.f32.mrb[0].mxu0
        %v598 = vadd.f32 0.0, %v597
        %599 = vmatprep.mubr.f32.mxu0 0.0
        %600 = vmatmul.mubr.f32.gmra.mrb[0].mxu0 %v363
        %v601 = vpop.f32.mrb[0].mxu0
        %v602 = vadd.f32 0.0, %v601
        %v603 = vpop.f32.mrb[0].mxu0
        %v604 = vadd.f32 0.0, %v603
        %605 = vmatprep.mubr.f32.mxu0 0.0
        %606 = vmatmul.mubr.f32.gmra.mrb[0].mxu0 %v366
        %v607 = vpop.f32.mrb[0].mxu0
        %v608 = vadd.f32 0.0, %v607
        %v609 = vpop.f32.mrb[0].mxu0
        %v610 = vadd.f32 0.0, %v609
        %611 = vmatprep.mubr.f32.mxu0 0.0
        %612 = vmatmul.mubr.f32.gmra.mrb[0].mxu0 %v369
        %v613 = vpop.f32.mrb[0].mxu0
        %v614 = vadd.f32 0.0, %v613
        %v615 = vpop.f32.mrb[0].mxu0
        %v616 = vadd.f32 0.0, %v615
        %617 = vmatprep.mubr.f32.mxu0 0.0
        %618 = vmatmul.mubr.f32.gmra.mrb[0].mxu0 %v372
        %v619 = vpop.f32.mrb[0].mxu0
        %v620 = vadd.f32 0.0, %v619
        %v621 = vpop.f32.mrb[0].mxu0
        %v622 = vadd.f32 0.0, %v621
        %623 = vmatprep.mubr.f32.mxu0 0.0
        %624 = vmatmul.mubr.f32.gmra.mrb[0].mxu0 %v375
        %v625 = vpop.f32.mrb[0].mxu0
        %v626 = vadd.f32 0.0, %v625
        %v627 = vpop.f32.mrb[0].mxu0
        %v628 = vadd.f32 0.0, %v627
        %629 = vmatprep.mubr.f32.mxu0 0.0
        %630 = vmatmul.mubr.f32.gmra.mrb[0].mxu0 %v378
        %v631 = vpop.f32.mrb[0].mxu0
        %v632 = vadd.f32 0.0, %v631
        %v633 = vpop.f32.mrb[0].mxu0
        %v634 = vadd.f32 0.0, %v633
        %635 = vmatprep.mubr.f32.mxu0 0.0
        %636 = vmatmul.mubr.f32.gmra.mrb[0].mxu0 %v381
        %v637 = vpop.f32.mrb[0].mxu0
        %v638 = vadd.f32 0.0, %v637
        %v639 = vpop.f32.mrb[0].mxu0
        %v640 = vadd.f32 0.0, %v639
        %641 = vmatprep.mubr.f32.mxu0 0.0
        %642 = vmatmul.mubr.f32.gmra.mrb[0].mxu0 %v384
        %v643 = vpop.f32.mrb[0].mxu0
        %v644 = vadd.f32 0.0, %v643
        %v645 = vpop.f32.mrb[0].mxu0
        %v646 = vadd.f32 0.0, %v645
        %647 = vdwg.mxu0
        %v648 = vmax.f32 %v458, 0.0
        %v649 = vmax.f32 %v460, 0.0
        %v650 = vmax.f32 %v464, 0.0
        %v651 = vmax.f32 %v466, 0.0
        %v652 = vmax.f32 %v470, 0.0
        %v653 = vmax.f32 %v472, 0.0
        %v654 = vmax.f32 %v476, 0.0
        %v655 = vmax.f32 %v478, 0.0
        %v656 = vmax.f32 %v482, 0.0
        %v657 = vmax.f32 %v484, 0.0
        %v658 = vmax.f32 %v488, 0.0
        %v659 = vmax.f32 %v490, 0.0
        %v660 = vmax.f32 %v494, 0.0
        %v661 = vmax.f32 %v496, 0.0
        %v662 = vmax.f32 %v500, 0.0
        %v663 = vmax.f32 %v502, 0.0
        %v664 = vmax.f32 %v506, 0.0
        %v665 = vmax.f32 %v508, 0.0
        %v666 = vmax.f32 %v512, 0.0
        %v667 = vmax.f32 %v514, 0.0
        %v668 = vmax.f32 %v518, 0.0
        %v669 = vmax.f32 %v520, 0.0
        %v670 = vmax.f32 %v524, 0.0
        %v671 = vmax.f32 %v526, 0.0
        %v672 = vmax.f32 %v530, 0.0
        %v673 = vmax.f32 %v532, 0.0
        %v674 = vmax.f32 %v536, 0.0
        %v675 = vmax.f32 %v538, 0.0
        %v676 = vmax.f32 %v542, 0.0
        %v677 = vmax.f32 %v544, 0.0
        %v678 = vmax.f32 %v548, 0.0
        %v679 = vmax.f32 %v550, 0.0
        %v680 = vmax.f32 %v554, 0.0
        %v681 = vmax.f32 %v556, 0.0
        %v682 = vmax.f32 %v560, 0.0
        %v683 = vmax.f32 %v562, 0.0
        %v684 = vmax.f32 %v566, 0.0
        %v685 = vmax.f32 %v568, 0.0
        %v686 = vmax.f32 %v572, 0.0
        %v687 = vmax.f32 %v574, 0.0
        %v688 = vmax.f32 %v578, 0.0
        %v689 = vmax.f32 %v580, 0.0
        %v690 = vmax.f32 %v584, 0.0
        %v691 = vmax.f32 %v586, 0.0
        %v692 = vmax.f32 %v590, 0.0
        %v693 = vmax.f32 %v592, 0.0
        %v694 = vmax.f32 %v596, 0.0
        %v695 = vmax.f32 %v598, 0.0
        %v696 = vmax.f32 %v602, 0.0
        %v697 = vmax.f32 %v604, 0.0
        %v698 = vmax.f32 %v608, 0.0
        %v699 = vmax.f32 %v610, 0.0
        %v700 = vmax.f32 %v614, 0.0
        %v701 = vmax.f32 %v616, 0.0
        %v702 = vmax.f32 %v620, 0.0
        %v703 = vmax.f32 %v622, 0.0
        %v704 = vmax.f32 %v626, 0.0
        %v705 = vmax.f32 %v628, 0.0
        %v706 = vmax.f32 %v632, 0.0
        %v707 = vmax.f32 %v634, 0.0
        %v708 = vmax.f32 %v638, 0.0
        %v709 = vmax.f32 %v640, 0.0
        %v710 = vmax.f32 %v644, 0.0
        %v711 = vmax.f32 %v646, 0.0
        %v712 = vmul.f32 %v648, %v648
        %v713 = vmul.f32 %v649, %v649
        %v714 = vmul.f32 %v650, %v650
        %v715 = vmul.f32 %v651, %v651
        %v716 = vmul.f32 %v652, %v652
        %v717 = vmul.f32 %v653, %v653
        %v718 = vmul.f32 %v654, %v654
        %v719 = vmul.f32 %v655, %v655
        %v720 = vmul.f32 %v656, %v656
        %v721 = vmul.f32 %v657, %v657
        %v722 = vmul.f32 %v658, %v658
        %v723 = vmul.f32 %v659, %v659
        %v724 = vmul.f32 %v660, %v660
        %v725 = vmul.f32 %v661, %v661
        %v726 = vmul.f32 %v662, %v662
        %v727 = vmul.f32 %v663, %v663
        %v728 = vmul.f32 %v664, %v664
        %v729 = vmul.f32 %v665, %v665
        %v730 = vmul.f32 %v666, %v666
        %v731 = vmul.f32 %v667, %v667
        %v732 = vmul.f32 %v668, %v668
        %v733 = vmul.f32 %v669, %v669
        %v734 = vmul.f32 %v670, %v670
        %v735 = vmul.f32 %v671, %v671
        %v736 = vmul.f32 %v672, %v672
        %v737 = vmul.f32 %v673, %v673
        %v738 = vmul.f32 %v674, %v674
        %v739 = vmul.f32 %v675, %v675
        %v740 = vmul.f32 %v676, %v676
        %v741 = vmul.f32 %v677, %v677
        %v742 = vmul.f32 %v678, %v678
        %v743 = vmul.f32 %v679, %v679
        %v744 = vmul.f32 %v680, %v680
        %v745 = vmul.f32 %v681, %v681
        %v746 = vmul.f32 %v682, %v682
        %v747 = vmul.f32 %v683, %v683
        %v748 = vmul.f32 %v684, %v684
        %v749 = vmul.f32 %v685, %v685
        %v750 = vmul.f32 %v686, %v686
        %v751 = vmul.f32 %v687, %v687
        %v752 = vmul.f32 %v688, %v688
        %v753 = vmul.f32 %v689, %v689
        %v754 = vmul.f32 %v690, %v690
        %v755 = vmul.f32 %v691, %v691
        %v756 = vmul.f32 %v692, %v692
        %v757 = vmul.f32 %v693, %v693
        %v758 = vmul.f32 %v694, %v694
        %v759 = vmul.f32 %v695, %v695
        %v760 = vmul.f32 %v696, %v696
        %v761 = vmul.f32 %v697, %v697
        %v762 = vmul.f32 %v698, %v698
        %v763 = vmul.f32 %v699, %v699
        %v764 = vmul.f32 %v700, %v700
        %v765 = vmul.f32 %v701, %v701
        %v766 = vmul.f32 %v702, %v702
        %v767 = vmul.f32 %v703, %v703
        %v768 = vmul.f32 %v704, %v704
        %v769 = vmul.f32 %v705, %v705
        %v770 = vmul.f32 %v706, %v706
        %v771 = vmul.f32 %v707, %v707
        %v772 = vmul.f32 %v708, %v708
        %v773 = vmul.f32 %v709, %v709
        %v774 = vmul.f32 %v710, %v710
        %v775 = vmul.f32 %v711, %v711
        %v776 = vadd.f32 %v712, %v714
        %v777 = vadd.f32 %v776, %v716
        %v778 = vadd.f32 %v777, %v718
        %v779 = vadd.f32 %v778, %v720
        %v780 = vadd.f32 %v779, %v722
        %v781 = vadd.f32 %v780, %v724
        %v782 = vadd.f32 %v781, %v726
        %v783 = vadd.f32 %v782, %v728
        %v784 = vadd.f32 %v783, %v730
        %v785 = vadd.f32 %v784, %v732
        %v786 = vadd.f32 %v785, %v734
        %v787 = vadd.f32 %v786, %v736
        %v788 = vadd.f32 %v787, %v738
        %v789 = vadd.f32 %v788, %v740
        %v790 = vadd.f32 %v789, %v742
        %v791 = vadd.f32 %v790, %v744
        %v792 = vadd.f32 %v791, %v746
        %v793 = vadd.f32 %v792, %v748
        %v794 = vadd.f32 %v793, %v750
        %v795 = vadd.f32 %v794, %v752
        %v796 = vadd.f32 %v795, %v754
        %v797 = vadd.f32 %v796, %v756
        %v798 = vadd.f32 %v797, %v758
        %v799 = vadd.f32 %v798, %v760
        %v800 = vadd.f32 %v799, %v762
        %v801 = vadd.f32 %v800, %v764
        %v802 = vadd.f32 %v801, %v766
        %v803 = vadd.f32 %v802, %v768
        %v804 = vadd.f32 %v803, %v770
        %v805 = vadd.f32 %v804, %v772
        %v806 = vadd.f32 %v805, %v774
        %v807 = vrot.slane %v806, 4
        %v808 = vadd.f32 %v806, %v807
        %v809 = vrot.slane %v808, 2
        %v810 = vadd.f32 %v808, %v809
        %v811 = vrot.slane %v810, 1
        %v812 = vadd.f32 %v810, %v811
        %v813 = vadd.f32 %v713, %v715
        %v814 = vadd.f32 %v813, %v717
        %v815 = vadd.f32 %v814, %v719
        %v816 = vadd.f32 %v815, %v721
        %v817 = vadd.f32 %v816, %v723
        %v818 = vadd.f32 %v817, %v725
        %v819 = vadd.f32 %v818, %v727
        %v820 = vadd.f32 %v819, %v729
        %v821 = vadd.f32 %v820, %v731
        %v822 = vadd.f32 %v821, %v733
        %v823 = vadd.f32 %v822, %v735
        %v824 = vadd.f32 %v823, %v737
        %v825 = vadd.f32 %v824, %v739
        %v826 = vadd.f32 %v825, %v741
        %v827 = vadd.f32 %v826, %v743
        %v828 = vadd.f32 %v827, %v745
        %v829 = vadd.f32 %v828, %v747
        %v830 = vadd.f32 %v829, %v749
        %v831 = vadd.f32 %v830, %v751
        %v832 = vadd.f32 %v831, %v753
        %v833 = vadd.f32 %v832, %v755
        %v834 = vadd.f32 %v833, %v757
        %v835 = vadd.f32 %v834, %v759
        %v836 = vadd.f32 %v835, %v761
        %v837 = vadd.f32 %v836, %v763
        %v838 = vadd.f32 %v837, %v765
        %v839 = vadd.f32 %v838, %v767
        %v840 = vadd.f32 %v839, %v769
        %v841 = vadd.f32 %v840, %v771
        %v842 = vadd.f32 %v841, %v773
        %v843 = vadd.f32 %v842, %v775
        %v844 = vrot.slane %v843, 4
        %v845 = vadd.f32 %v843, %v844
        %v846 = vrot.slane %v845, 2
        %v847 = vadd.f32 %v845, %v846
        %v848 = vrot.slane %v847, 1
        %v849 = vadd.f32 %v847, %v848
        %v850 = vadd.f32 %v812, 1e-06
        %v851 = vadd.f32 %v849, 1e-06
        %v852 = vrsqrt.pop %v850
        %v853 = vrsqrt.pop %v851
        %v854 = vmul.f32 %v648, %v852
        %v855 = vmul.f32 %v649, %v853
        %v856 = vmul.f32 %v650, %v852
        %v857 = vmul.f32 %v651, %v853
        %v858 = vmul.f32 %v652, %v852
        %v859 = vmul.f32 %v653, %v853
        %v860 = vmul.f32 %v654, %v852
        %v861 = vmul.f32 %v655, %v853
        %v862 = vmul.f32 %v656, %v852
        %v863 = vmul.f32 %v657, %v853
        %v864 = vmul.f32 %v658, %v852
        %v865 = vmul.f32 %v659, %v853
        %v866 = vmul.f32 %v660, %v852
        %v867 = vmul.f32 %v661, %v853
        %v868 = vmul.f32 %v662, %v852
        %v869 = vmul.f32 %v663, %v853
        %v870 = vmul.f32 %v664, %v852
        %v871 = vmul.f32 %v665, %v853
        %v872 = vmul.f32 %v666, %v852
        %v873 = vmul.f32 %v667, %v853
        %v874 = vmul.f32 %v668, %v852
        %v875 = vmul.f32 %v669, %v853
        %v876 = vmul.f32 %v670, %v852
        %v877 = vmul.f32 %v671, %v853
        %v878 = vmul.f32 %v672, %v852
        %v879 = vmul.f32 %v673, %v853
        %v880 = vmul.f32 %v674, %v852
        %v881 = vmul.f32 %v675, %v853
        %v882 = vmul.f32 %v676, %v852
        %v883 = vmul.f32 %v677, %v853
        %v884 = vmul.f32 %v678, %v852
        %v885 = vmul.f32 %v679, %v853
        %v886 = vmul.f32 %v680, %v852
        %v887 = vmul.f32 %v681, %v853
        %v888 = vmul.f32 %v682, %v852
        %v889 = vmul.f32 %v683, %v853
        %v890 = vmul.f32 %v684, %v852
        %v891 = vmul.f32 %v685, %v853
        %v892 = vmul.f32 %v686, %v852
        %v893 = vmul.f32 %v687, %v853
        %v894 = vmul.f32 %v688, %v852
        %v895 = vmul.f32 %v689, %v853
        %v896 = vmul.f32 %v690, %v852
        %v897 = vmul.f32 %v691, %v853
        %v898 = vmul.f32 %v692, %v852
        %v899 = vmul.f32 %v693, %v853
        %v900 = vmul.f32 %v694, %v852
        %v901 = vmul.f32 %v695, %v853
        %v902 = vmul.f32 %v696, %v852
        %v903 = vmul.f32 %v697, %v853
        %v904 = vmul.f32 %v698, %v852
        %v905 = vmul.f32 %v699, %v853
        %v906 = vmul.f32 %v700, %v852
        %v907 = vmul.f32 %v701, %v853
        %v908 = vmul.f32 %v702, %v852
        %v909 = vmul.f32 %v703, %v853
        %v910 = vmul.f32 %v704, %v852
        %v911 = vmul.f32 %v705, %v853
        %v912 = vmul.f32 %v706, %v852
        %v913 = vmul.f32 %v707, %v853
        %v914 = vmul.f32 %v708, %v852
        %v915 = vmul.f32 %v709, %v853
        %v916 = vmul.f32 %v710, %v852
        %v917 = vmul.f32 %v711, %v853
        %918 = vst [vmem:[%s215] sm:$0xff] %v854
        %919 = vst [vmem:[%s215 + $0x8] sm:$0xff] %v855
        %920 = vst [vmem:[%s215 + $0x10] sm:$0xff] %v856
        %921 = vst [vmem:[%s215 + $0x18] sm:$0xff] %v857
        %922 = vst [vmem:[%s215 + $0x20] sm:$0xff] %v858
        %923 = vst [vmem:[%s215 + $0x28] sm:$0xff] %v859
        %924 = vst [vmem:[%s215 + $0x30] sm:$0xff] %v860
        %925 = vst [vmem:[%s215 + $0x38] sm:$0xff] %v861
        %926 = vst [vmem:[%s215 + $0x40] sm:$0xff] %v862
        %927 = vst [vmem:[%s215 + $0x48] sm:$0xff] %v863
        %928 = vst [vmem:[%s215 + $0x50] sm:$0xff] %v864
        %929 = vst [vmem:[%s215 + $0x58] sm:$0xff] %v865
        %930 = vst [vmem:[%s215 + $0x60] sm:$0xff] %v866
        %931 = vst [vmem:[%s215 + $0x68] sm:$0xff] %v867
        %932 = vst [vmem:[%s215 + $0x70] sm:$0xff] %v868
        %933 = vst [vmem:[%s215 + $0x78] sm:$0xff] %v869
        %934 = vst [vmem:[%s215 + $0x80] sm:$0xff] %v870
        %935 = vst [vmem:[%s215 + $0x88] sm:$0xff] %v871
        %936 = vst [vmem:[%s215 + $0x90] sm:$0xff] %v872
        %937 = vst [vmem:[%s215 + $0x98] sm:$0xff] %v873
        %938 = vst [vmem:[%s215 + $0xa0] sm:$0xff] %v874
        %939 = vst [vmem:[%s215 + $0xa8] sm:$0xff] %v875
        %940 = vst [vmem:[%s215 + $0xb0] sm:$0xff] %v876
        %941 = vst [vmem:[%s215 + $0xb8] sm:$0xff] %v877
        %942 = vst [vmem:[%s215 + $0xc0] sm:$0xff] %v878
        %943 = vst [vmem:[%s215 + $0xc8] sm:$0xff] %v879
        %944 = vst [vmem:[%s215 + $0xd0] sm:$0xff] %v880
        %945 = vst [vmem:[%s215 + $0xd8] sm:$0xff] %v881
        %946 = vst [vmem:[%s215 + $0xe0] sm:$0xff] %v882
        %947 = vst [vmem:[%s215 + $0xe8] sm:$0xff] %v883
        %948 = vst [vmem:[%s215 + $0xf0] sm:$0xff] %v884
        %949 = vst [vmem:[%s215 + $0xf8] sm:$0xff] %v885
        %950 = vst [vmem:[%s215 + $0x100] sm:$0xff] %v886
        %951 = vst [vmem:[%s215 + $0x108] sm:$0xff] %v887
        %952 = vst [vmem:[%s215 + $0x110] sm:$0xff] %v888
        %953 = vst [vmem:[%s215 + $0x118] sm:$0xff] %v889
        %954 = vst [vmem:[%s215 + $0x120] sm:$0xff] %v890
        %955 = vst [vmem:[%s215 + $0x128] sm:$0xff] %v891
        %956 = vst [vmem:[%s215 + $0x130] sm:$0xff] %v892
        %957 = vst [vmem:[%s215 + $0x138] sm:$0xff] %v893
        %958 = vst [vmem:[%s215 + $0x140] sm:$0xff] %v894
        %959 = vst [vmem:[%s215 + $0x148] sm:$0xff] %v895
        %960 = vst [vmem:[%s215 + $0x150] sm:$0xff] %v896
        %961 = vst [vmem:[%s215 + $0x158] sm:$0xff] %v897
        %962 = vst [vmem:[%s215 + $0x160] sm:$0xff] %v898
        %963 = vst [vmem:[%s215 + $0x168] sm:$0xff] %v899
        %964 = vst [vmem:[%s215 + $0x170] sm:$0xff] %v900
        %965 = vst [vmem:[%s215 + $0x178] sm:$0xff] %v901
        %966 = vst [vmem:[%s215 + $0x180] sm:$0xff] %v902
        %967 = vst [vmem:[%s215 + $0x188] sm:$0xff] %v903
        %968 = vst [vmem:[%s215 + $0x190] sm:$0xff] %v904
        %969 = vst [vmem:[%s215 + $0x198] sm:$0xff] %v905
        %970 = vst [vmem:[%s215 + $0x1a0] sm:$0xff] %v906
        %971 = vst [vmem:[%s215 + $0x1a8] sm:$0xff] %v907
        %972 = vst [vmem:[%s215 + $0x1b0] sm:$0xff] %v908
        %973 = vst [vmem:[%s215 + $0x1b8] sm:$0xff] %v909
        %974 = vst [vmem:[%s215 + $0x1c0] sm:$0xff] %v910
        %975 = vst [vmem:[%s215 + $0x1c8] sm:$0xff] %v911
        %976 = vst [vmem:[%s215 + $0x1d0] sm:$0xff] %v912
        %977 = vst [vmem:[%s215 + $0x1d8] sm:$0xff] %v913
        %978 = vst [vmem:[%s215 + $0x1e0] sm:$0xff] %v914
        %979 = vst [vmem:[%s215 + $0x1e8] sm:$0xff] %v915
        %980 = vst [vmem:[%s215 + $0x1f0] sm:$0xff] %v916
        %981 = vst [vmem:[%s215 + $0x1f8] sm:$0xff] %v917
        %s982 = sand.u32 %s98, 1
        %s983 = scalar_lea.sflag [#allocation4], %s982
        %s984 = sand.u32 %s98, 1
        %s985 = smul.addr %s984, 512
        %s986 = scalar_lea.vmem [#allocation7], %s985
        // Predicated region
        $region37: #{tpu_custom_call.1} parent=27 // pred_check
          %p987 = pneg %p108
        $region38: #{tpu_custom_call.1} parent=27 // pred_check_branch
          %989 = sbr.rel (%p987) target = $region40
        $region39: #{tpu_custom_call.1} parent=27 // pred_region
          %s990 = smul.u32 2, %s27
          %s992 = ssub.s32 8192, 8192
          %993 = vsyncadd %s983, %s992
          %s994 = smul.addr %s26, 64
          %s995 = sadd.s32 %s990, %s994
          %s996 = smul.addr %s995, 128
          %s997 = scalar_lea.hbm %s2, %s996
          %s998 = sshll.u32 %s986, 4
          %s999 = int_to_ptr.vmem [resolvable:$true] %s998
          %1004 = dma.vmem_to_hbm [thread:$0]  %s999, 8192, %s997, %s983, 256, 256, 16
        $region40: #{tpu_custom_call.1} parent=27 // pred_fallthru
          _
      $region28: #{tpu_custom_call.1} parent=5 // pred_fallthru
        _
      %p1005 = scmp.le.s32.totalorder 2, %s17
      // Predicated region
      $region41: #{tpu_custom_call.1} parent=5 // pred_check
        %p1006 = pneg %p1005
      $region42: #{tpu_custom_call.1} parent=5 // pred_check_branch
        %1008 = sbr.rel (%p1006) target = $region44
      $region43: #{tpu_custom_call.1} parent=5 // pred_region
        %s1009 = ssub.s32 %s17, 2
        // Predicated region
        $region45: #{tpu_custom_call.1} parent=43 // pred_check
          %p1010 = pneg %p114
        $region46: #{tpu_custom_call.1} parent=43 // pred_check_branch
          %1012 = sbr.rel (%p1010) target = $region48
        $region47: #{tpu_custom_call.1} parent=43 // pred_region
          %s1013 = sand.u32 %s99, 1
          %s1014 = scalar_lea.sflag [#allocation4], %s1013
          %s1015 = sand.u32 %s99, 1
          %s1016 = smul.addr %s1015, 512
          %s1017 = scalar_lea.vmem [#allocation7], %s1016
          %1018 = dma.done %s1014, 8192
        $region48: #{tpu_custom_call.1} parent=43 // pred_fallthru
          _
      $region44: #{tpu_custom_call.1} parent=5 // pred_fallthru
        _
    $region6: #{tpu_custom_call.1} parent=1 // loop_footer
      %s21 = sadd.s32 1, %s17
    $region7: #{tpu_custom_call.1} parent=1 // loop_footer_branch
      %16 = sbr.rel target = $region3
    $region8: #{tpu_custom_call.1} parent=1 // loop_exit
      _
    %1019 = vsyncpa [#allocation3], 1
    %s1020 = scalar_lea.sflag [#allocation3], 1
    %1021 = vsyncpa %s1020, 1
    %1022 = vsyncpa [#allocation6], 1
    %s1023 = scalar_lea.sflag [#allocation6], 1
    %1024 = vsyncpa %s1023, 1
    %1025 = vsyncpa [#allocation4], 1
    %s1026 = scalar_lea.sflag [#allocation4], 1
    %1027 = vsyncpa %s1026, 1

</llo_original>
